<compile_context>
chip_gen: v6e
topology: v6e:2x2x1
jax: 0.10.0
libtpu: 0.0.40
codegen_flags: <defaults>
</compile_context>

<pallas_src>
import functools

import jax
import jax.numpy as jnp
from jax.experimental import pallas as pl
from jax.experimental.pallas import tpu as pltpu

PAD_IDX = 0   # PAD_IDX is an undefined global in the reference; fixed to 0 here.
EPS = 0.1     # label-smoothing eps used in compute_mle_loss


def _cdiv(a, b):
    return -(-a // b)


def _tpu_config():
    """Return (vmem_limit_bytes, num_tensorcores), conservative + generation-aware."""
    vmem_core = 64 * 1024 * 1024          # safe default: v7x per-TC VMEM
    num_cores = 2                          # safe default: extra axis is a serial loop on 1-TC parts
    kind = ""
    try:
        kind = jax.devices()[0].device_kind.lower()
    except Exception:
        pass
    try:
        v = getattr(pltpu.get_tpu_info(), "vmem_capacity_bytes", None)
        if isinstance(v, int) and v >= 32 * 1024 * 1024:
            vmem_core = v
    except Exception:
        pass
    if any(t in kind for t in ("v5e", "v5 lite", "v5lite", "v6e", "v6 lite", "v6lite")):
        num_cores = 1                      # single TensorCore per chip
    if "v7" in kind:
        vmem_core = min(vmem_core, 64 * 1024 * 1024)   # 64 MiB per TC on v7x
    vmem_limit = min(int(vmem_core * 3 // 4), 96 * 1024 * 1024)
    return vmem_limit, num_cores


def _mle_loss_kernel(pred_ref, tgt_ref, loss_ref, ncorrect_ref, *,
                     pad_idx, eps, n_class, n_tok, tile_n, chunk_rows,
                     n_chunks, tiles_per_core):
    """Label-smoothed NLL + correct-count for one (tile_n, n_class) logits tile.

    The DMA block is large; compute walks it in chunk_rows sub-chunks to bound
    live vregs and VMEM temporaries.  Per-core scalar accumulators live in the
    resident (1,1,1) output block across the reduction grid axis.
    """
    c = pl.program_id(0)   # per-core partials ("parallel")
    i = pl.program_id(1)   # token-tile reduction axis ("arbitrary")

    @pl.when(i == 0)
    def _():
        loss_ref[...] = jnp.zeros_like(loss_ref)
        ncorrect_ref[...] = jnp.zeros_like(ncorrect_ref)

    # Global row of this tile's first row, from the UNclamped tile id.  The
    # index_map clamps the DMA so it never reads out of range; rows at or past
    # n_tok (ragged tail / duplicated clamped tiles) are masked out below.
    tile_row0 = (c * tiles_per_core + i) * tile_n

    uni = eps / (n_class - 1)

    @pl.loop(0, n_chunks)
    def _(s):
        r = s * chunk_rows
        rs = pl.multiple_of(r, chunk_rows)
        logits = pred_ref[pl.ds(rs, chunk_rows), :].astype(jnp.float32)  # (RC, C)
        tgt = tgt_ref[pl.ds(rs, chunk_rows), :]                          # (RC, 1)

        # Row max and log-sum-exp (single fused sub/exp pass + lane reduce).
        m = jnp.max(logits, axis=1, keepdims=True)                       # (RC, 1)
        # TODO(synk): on v7x the single EUP slot may bind before HBM; a bf16
        # exp with f32 accumulation could relieve it if accuracy allows.
        lse = jnp.log(jnp.sum(jnp.exp(logits - m), axis=1, keepdims=True))

        # Target gather and class-sum on RAW logits (no full-tile 'shifted').
        # NOTE: if the XLU ever saturates, the constant-mask sum below could be
        # offloaded to the idle MXU via a ones-column matmul; neutral while the
        # kernel is HBM/EUP-bound, so it is kept on the XLU.
        class_ids = jax.lax.broadcasted_iota(jnp.int32, logits.shape, 1)
        is_tgt = class_ids == tgt
        tgt_logit = jnp.sum(jnp.where(is_tgt, logits, 0.0), axis=1,
                            keepdims=True)                               # (RC, 1)
        sum_raw = jnp.sum(logits, axis=1, keepdims=True)                 # (RC, 1)

        shifted_tgt = tgt_logit - m
        sum_shifted = sum_raw - float(n_class) * m

        # loss = -(smooth * log_softmax).sum(1)
        #      = lse - [(1-eps)*shifted_tgt + eps/(C-1)*(sum_shifted - shifted_tgt)]
        row_loss = lse - ((1.0 - eps) * shifted_tgt
                          + uni * (sum_shifted - shifted_tgt))           # (RC, 1)

        # True argmax semantics: lowest class index attaining the row max
        # (matches torch .max(1)[1] / jnp.argmax, including exact f32 ties).
        arg = jnp.min(jnp.where(logits == m, class_ids, n_class), axis=1,
                      keepdims=True)                                     # (RC, 1)

        # Row validity: inside the real token range and not a PAD target.
        row_ids = tile_row0 + r + jax.lax.broadcasted_iota(
            jnp.int32, (chunk_rows, 1), 0)
        valid = jnp.logical_and(row_ids < n_tok, tgt != pad_idx)         # (RC, 1)

        chunk_loss = jnp.sum(jnp.where(valid, row_loss, 0.0), keepdims=True)
        chunk_correct = jnp.sum(
            jnp.where(jnp.logical_and(valid, arg == tgt), 1, 0).astype(jnp.int32),
            keepdims=True)

        loss_ref[...] += chunk_loss.reshape(1, 1, 1)
        ncorrect_ref[...] += chunk_correct.reshape(1, 1, 1)


def learner_mle_loss(pred_logits, target, *, pad_idx=PAD_IDX, eps=EPS,
                     num_cores=None, chunk_budget_bytes=4 * 1024 * 1024):
    """Pallas version of Learner.compute_mle_loss(pred, target, smoothing=True).

    pred_logits: (n_tok, n_class) f32 or bf16 (bf16 ingest preferred — halves
    HBM traffic; cast to f32 happens per-chunk in VMEM).  target: (n_tok,) int.
    Returns (summed loss over non-pad tokens, n_correct).
    """
    n_tok, n_class = pred_logits.shape
    itemsize = jnp.dtype(pred_logits.dtype).itemsize
    vmem_limit, detected_cores = _tpu_config()
    if num_cores is None:
        num_cores = detected_cores

    # Sublane alignment of row blocks: bf16 packs 2 rows/sublane, int8/fp8 4.
    sub = {1: 32, 2: 16}.get(itemsize, 8)

    # Physical lane footprint of one logits row in VMEM.
    c_lanes = _cdiv(n_class, 128) * 128

    # Compute chunk: bounds the ~4 chunk-sized f32 temporaries (cast, exp,
    # iota/masks) the body materializes, independent of the DMA tile size.
    chunk_rows = (chunk_budget_bytes // (4 * c_lanes * 4)) // sub * sub
    chunk_rows = max(sub, min(256, chunk_rows, _cdiv(n_tok, sub) * sub))

    # DMA tile: as many chunks as fit a conservative slice of the VMEM limit
    # (double-buffered logits + double-buffered int32 targets + temp headroom).
    tile_budget = int(vmem_limit * 0.55)
    bytes_per_row = 2 * (c_lanes * itemsize + 128 * 4)
    max_rows = max(chunk_rows,
                   (tile_budget // bytes_per_row) // chunk_rows * chunk_rows)

    rows_per_core = _cdiv(n_tok, num_cores)
    tile_n = min(max_rows, _cdiv(rows_per_core, chunk_rows) * chunk_rows)
    tile_n = max(chunk_rows, tile_n // chunk_rows * chunk_rows)
    n_chunks = tile_n // chunk_rows

    total_tiles = _cdiv(n_tok, tile_n)
    tiles_per_core = _cdiv(total_tiles, num_cores)

    tgt2d = target.reshape(n_tok, 1).astype(jnp.int32)

    kernel = functools.partial(
        _mle_loss_kernel, pad_idx=pad_idx, eps=eps, n_class=n_class,
        n_tok=n_tok, tile_n=tile_n, chunk_rows=chunk_rows, n_chunks=n_chunks,
        tiles_per_core=tiles_per_core)

    def in_map(c, i):
        # Clamp so an over-provisioned (core, tile) slot never addresses a
        # block fully past the array; the kernel's global-row mask zeroes
        # any contribution from such duplicated/ragged tiles.
        t = jnp.minimum(c * tiles_per_core + i, total_tiles - 1)
        return (t, 0)

    loss_parts, nc_parts = pl.pallas_call(
        kernel,
        out_shape=(jax.ShapeDtypeStruct((num_cores, 1, 1), jnp.float32),
                   jax.ShapeDtypeStruct((num_cores, 1, 1), jnp.int32)),
        grid_spec=pltpu.PrefetchScalarGridSpec(
            num_scalar_prefetch=0,
            grid=(num_cores, tiles_per_core),
            in_specs=[
                # Class block dim == full n_class: no physical padding; Mosaic
                # masks the ragged lane tail inside lane reductions.
                pl.BlockSpec((tile_n, n_class), in_map),
                pl.BlockSpec((tile_n, 1), in_map),
            ],
            out_specs=(
                pl.BlockSpec((1, 1, 1), lambda c, i: (c, 0, 0)),
                pl.BlockSpec((1, 1, 1), lambda c, i: (c, 0, 0)),
            ),
        ),
        compiler_params=pltpu.CompilerParams(
            # axis 0: per-core partial accumulators (both v7x TCs; serial and
            # harmless on single-TC v5e/v6e); axis 1: token-tile reduction
            # into the resident output block.
            dimension_semantics=("parallel", "arbitrary"),
            vmem_limit_bytes=vmem_limit),
    )(pred_logits, tgt2d)

    return jnp.sum(loss_parts), jnp.sum(nc_parts)


def _reference_mle_loss(pred, target, pad_idx=PAD_IDX, eps=EPS):
    n_class = pred.shape[1]
    logp = jax.nn.log_softmax(pred.astype(jnp.float32), axis=1)
    one_hot = jax.nn.one_hot(target, n_class, dtype=jnp.float32)
    smooth = one_hot * (1.0 - eps) + (1.0 - one_hot) * (eps / (n_class - 1))
    row_loss = -(smooth * logp).sum(axis=1)
    mask = target != pad_idx
    loss = jnp.sum(jnp.where(mask, row_loss, 0.0))
    pred_max = jnp.argmax(pred.astype(jnp.float32), axis=1)
    n_correct = jnp.sum(jnp.logical_and(pred_max == target, mask))
    return loss, n_correct


if __name__ == "__main__":
    key = jax.random.PRNGKey(0)
    k1, k2, k3, k4, k5, k6, k7 = jax.random.split(key, 7)

    # --- Test 1: shapes implied by the module (decoder targets y[:, 1:]) ---
    batch, seq_len, vocab = 2, 9, 128        # 2*8 = 16 tokens
    pred1 = jax.random.normal(k1, (batch * (seq_len - 1), vocab), jnp.float32)
    tgt1 = jax.random.randint(k2, (batch * (seq_len - 1),), 1, vocab, jnp.int32)
    tgt1 = jnp.where(jax.random.bernoulli(k3, 0.2, tgt1.shape), PAD_IDX, tgt1)

    loss1, nc1 = learner_mle_loss(pred1, tgt1)
    loss1 = jax.block_until_ready(loss1)
    nc1 = jax.block_until_ready(nc1)
    ref_loss1, ref_nc1 = _reference_mle_loss(pred1, tgt1)
    assert jnp.allclose(loss1, ref_loss1, rtol=1e-4, atol=1e-2), (loss1, ref_loss1)
    assert int(nc1) == int(ref_nc1), (nc1, ref_nc1)

    # --- Test 2: ragged token tail + non-lane-multiple vocab, f32 ---
    n_tok2, vocab2 = 600, 200                # neither a tile nor lane multiple
    pred2 = jax.random.normal(k4, (n_tok2, vocab2), jnp.float32)
    tgt2 = jax.random.randint(k5, (n_tok2,), 1, vocab2, jnp.int32)
    tgt2 = jnp.where(jax.random.bernoulli(k6, 0.15, tgt2.shape), PAD_IDX, tgt2)

    loss2, nc2 = learner_mle_loss(pred2, tgt2)
    loss2 = jax.block_until_ready(loss2)
    nc2 = jax.block_until_ready(nc2)
    ref_loss2, ref_nc2 = _reference_mle_loss(pred2, tgt2)
    assert jnp.allclose(loss2, ref_loss2, rtol=1e-4, atol=1e-2), (loss2, ref_loss2)
    assert int(nc2) == int(ref_nc2), (nc2, ref_nc2)

    # --- Test 3: bf16 ingest path (halved HBM bytes; f32 math in-kernel) ---
    pred3 = jax.random.normal(k7, (n_tok2, vocab2), jnp.float32).astype(jnp.bfloat16)
    loss3, nc3 = learner_mle_loss(pred3, tgt2)
    loss3 = jax.block_until_ready(loss3)
    nc3 = jax.block_until_ready(nc3)
    ref_loss3, ref_nc3 = _reference_mle_loss(pred3.astype(jnp.float32), tgt2)
    assert jnp.allclose(loss3, ref_loss3, rtol=1e-4, atol=5e-2), (loss3, ref_loss3)
    assert int(nc3) == int(ref_nc3), (nc3, ref_nc3)

    print("KERNEL_OK")
</pallas_src>

<mosaic_0001>
module attributes {stable_mosaic.version = 11 : i64} {
  func.func @_mle_loss_kernel(%arg0: i32, %arg1: i32, %arg2: memref<16x128xf32, #tpu.memory_space<vmem>>, %arg3: memref<16x1xi32, #tpu.memory_space<vmem>>, %arg4: memref<1x1x1xf32, #tpu.memory_space<vmem>>, %arg5: memref<1x1x1xi32, #tpu.memory_space<vmem>>) attributes {dimension_semantics = [#tpu.dimension_semantics<parallel>, #tpu.dimension_semantics<arbitrary>], iteration_bounds = array<i64: 2, 1>, scalar_prefetch = 0 : i64, scratch_operands = 0 : i64, tpu.core_type = #tpu.core_type<tc>, window_params = [{transform_indices = @transform_0, window_bounds = array<i64: 16, 128>}, {transform_indices = @transform_1, window_bounds = array<i64: 16, 1>}, {transform_indices = @transform_2, window_bounds = array<i64: 1, 1, 1>}, {transform_indices = @transform_3, window_bounds = array<i64: 1, 1, 1>}]} {
    %c0_i32 = arith.constant 0 : i32
    %0 = arith.cmpi eq, %arg1, %c0_i32 : i32
    %1 = arith.extui %0 : i1 to i32
    %c0_i32_0 = arith.constant 0 : i32
    %2 = arith.cmpi ne, %1, %c0_i32_0 : i32
    scf.if %2 {
      %cst_34 = arith.constant 0.000000e+00 : f32
      %82 = vector.broadcast %cst_34 : f32 to vector<1x1x1xf32>
      %c0_35 = arith.constant 0 : index
      %c0_36 = arith.constant 0 : index
      %c0_37 = arith.constant 0 : index
      %83 = vector.load %arg4[%c0_35, %c0_36, %c0_37] : memref<1x1x1xf32, #tpu.memory_space<vmem>>, vector<1x1x1xf32>
      tpu.vector_store %arg4[%c0_35, %c0_36, %c0_37], %82 {strides = array<i32>} : memref<1x1x1xf32, #tpu.memory_space<vmem>>, vector<1x1x1xf32>,
      %c0_i32_38 = arith.constant 0 : i32
      %84 = vector.broadcast %c0_i32_38 : i32 to vector<1x1x1xi32>
      %c0_39 = arith.constant 0 : index
      %c0_40 = arith.constant 0 : index
      %c0_41 = arith.constant 0 : index
      %85 = vector.load %arg5[%c0_39, %c0_40, %c0_41] : memref<1x1x1xi32, #tpu.memory_space<vmem>>, vector<1x1x1xi32>
      tpu.vector_store %arg5[%c0_39, %c0_40, %c0_41], %84 {strides = array<i32>} : memref<1x1x1xi32, #tpu.memory_space<vmem>>, vector<1x1x1xi32>,
    } else {
    }
    %c1_i32 = arith.constant 1 : i32
    %3 = arith.muli %arg0, %c1_i32 : i32
    %4 = arith.addi %3, %arg1 : i32
    %c16_i32 = arith.constant 16 : i32
    %5 = arith.muli %4, %c16_i32 : i32
    %c0_i32_1 = arith.constant 0 : i32
    %c1_i32_2 = arith.constant 1 : i32
    %6 = arith.muli %c0_i32_1, %c1_i32_2 : i32
    %c0_i32_3 = arith.constant 0 : i32
    %7 = arith.addi %c0_i32_3, %6 : i32
    %c16_i32_4 = arith.constant 16 : i32
    %8 = arith.muli %7, %c16_i32_4 : i32
    %9 = tpu.assume_multiple %8, 16 : i32
    %10 = arith.index_cast %9 : i32 to index
    %c0 = arith.constant 0 : index
    %11 = vector.load %arg2[%10, %c0] : memref<16x128xf32, #tpu.memory_space<vmem>>, vector<16x128xf32>
    %12 = arith.index_cast %9 : i32 to index
    %c0_5 = arith.constant 0 : index
    %13 = vector.load %arg3[%12, %c0_5] : memref<16x1xi32, #tpu.memory_space<vmem>>, vector<16x1xi32>
    %cst = arith.constant dense<0xFF800000> : vector<16xf32>
    %14 = vector.multi_reduction <maximumf>, %11, %cst [1] : vector<16x128xf32> to vector<16xf32>
    %15 = vector.shape_cast %14 : vector<16xf32> to vector<16x1xf32>
    %16 = vector.broadcast %15 : vector<16x1xf32> to vector<16x128xf32>
    %17 = arith.subf %11, %16 : vector<16x128xf32>
    %18 = math.exp %17 : vector<16x128xf32>
    %cst_6 = arith.constant dense<0.000000e+00> : vector<16xf32>
    %19 = vector.multi_reduction <add>, %18, %cst_6 [1] : vector<16x128xf32> to vector<16xf32>
    %20 = vector.shape_cast %19 : vector<16xf32> to vector<16x1xf32>
    %21 = math.log %20 : vector<16x1xf32>
    %22 = tpu.iota {dimensions = array<i32: 1>} : vector<16x128xi32>
    %23 = vector.broadcast %13 : vector<16x1xi32> to vector<16x128xi32>
    %24 = arith.cmpi eq, %22, %23 : vector<16x128xi32>
    %cst_7 = arith.constant 0.000000e+00 : f32
    %25 = vector.broadcast %cst_7 : f32 to vector<16x128xf32>
    %26 = arith.select %24, %11, %25 : vector<16x128xi1>, vector<16x128xf32>
    %cst_8 = arith.constant dense<0.000000e+00> : vector<16xf32>
    %27 = vector.multi_reduction <add>, %26, %cst_8 [1] : vector<16x128xf32> to vector<16xf32>
    %28 = vector.shape_cast %27 : vector<16xf32> to vector<16x1xf32>
    %cst_9 = arith.constant dense<0.000000e+00> : vector<16xf32>
    %29 = vector.multi_reduction <add>, %11, %cst_9 [1] : vector<16x128xf32> to vector<16xf32>
    %30 = vector.shape_cast %29 : vector<16xf32> to vector<16x1xf32>
    %31 = arith.subf %28, %15 : vector<16x1xf32>
    %cst_10 = arith.constant 1.280000e+02 : f32
    %32 = vector.broadcast %cst_10 : f32 to vector<16x1xf32>
    %33 = arith.mulf %32, %15 : vector<16x1xf32>
    %34 = arith.subf %30, %33 : vector<16x1xf32>
    %cst_11 = arith.constant 0.899999976 : f32
    %35 = vector.broadcast %cst_11 : f32 to vector<16x1xf32>
    %36 = arith.mulf %35, %31 : vector<16x1xf32>
    %37 = arith.subf %34, %31 : vector<16x1xf32>
    %cst_12 = arith.constant 7.87401571E-4 : f32
    %38 = vector.broadcast %cst_12 : f32 to vector<16x1xf32>
    %39 = arith.mulf %38, %37 : vector<16x1xf32>
    %40 = arith.addf %36, %39 : vector<16x1xf32>
    %41 = arith.subf %21, %40 : vector<16x1xf32>
    %42 = vector.broadcast %15 : vector<16x1xf32> to vector<16x128xf32>
    %43 = arith.cmpf oeq, %11, %42 : vector<16x128xf32>
    %c128_i32 = arith.constant 128 : i32
    %44 = vector.broadcast %c128_i32 : i32 to vector<16x128xi32>
    %45 = arith.select %43, %22, %44 : vector<16x128xi1>, vector<16x128xi32>
    %cst_13 = arith.constant dense<2147483647> : vector<16xi32>
    %46 = vector.multi_reduction <minsi>, %45, %cst_13 [1] : vector<16x128xi32> to vector<16xi32>
    %47 = vector.shape_cast %46 : vector<16xi32> to vector<16x1xi32>
    %48 = arith.addi %5, %8 : i32
    %49 = tpu.iota {dimensions = array<i32: 0>} : vector<16x1xi32>
    %50 = vector.broadcast %48 : i32 to vector<16x1xi32>
    %51 = arith.addi %50, %49 : vector<16x1xi32>
    %c16_i32_14 = arith.constant 16 : i32
    %52 = vector.broadcast %c16_i32_14 : i32 to vector<16x1xi32>
    %53 = arith.cmpi slt, %51, %52 : vector<16x1xi32>
    %c0_i32_15 = arith.constant 0 : i32
    %54 = vector.broadcast %c0_i32_15 : i32 to vector<16x1xi32>
    %55 = arith.cmpi ne, %13, %54 : vector<16x1xi32>
    %56 = arith.andi %53, %55 : vector<16x1xi1>
    %cst_16 = arith.constant 0.000000e+00 : f32
    %57 = vector.broadcast %cst_16 : f32 to vector<16x1xf32>
    %58 = arith.select %56, %41, %57 : vector<16x1xi1>, vector<16x1xf32>
    %59 = vector.shape_cast %58 : vector<16x1xf32> to vector<1x16x1xf32>
    %cst_17 = arith.constant dense<0.000000e+00> : vector<1xf32>
    %60 = vector.multi_reduction <add>, %59, %cst_17 [1, 2] : vector<1x16x1xf32> to vector<1xf32>
    %61 = vector.shape_cast %60 : vector<1xf32> to vector<1x1x1xf32>
    %62 = vector.extract %61[0, 0, 0] : f32 from vector<1x1x1xf32>
    %63 = vector.broadcast %62 : f32 to vector<1x1xf32>
    %64 = arith.cmpi eq, %47, %13 : vector<16x1xi32>
    %65 = arith.andi %56, %64 : vector<16x1xi1>
    %c1_i32_18 = arith.constant 1 : i32
    %c0_i32_19 = arith.constant 0 : i32
    %66 = vector.broadcast %c1_i32_18 : i32 to vector<16x1xi32>
    %67 = vector.broadcast %c0_i32_19 : i32 to vector<16x1xi32>
    %68 = arith.select %65, %66, %67 : vector<16x1xi1>, vector<16x1xi32>
    %69 = vector.shape_cast %68 : vector<16x1xi32> to vector<1x16x1xi32>
    %cst_20 = arith.constant dense<0> : vector<1xi32>
    %70 = vector.multi_reduction <add>, %69, %cst_20 [1, 2] : vector<1x16x1xi32> to vector<1xi32>
    %71 = vector.shape_cast %70 : vector<1xi32> to vector<1x1x1xi32>
    %72 = vector.extract %71[0, 0, 0] : i32 from vector<1x1x1xi32>
    %73 = vector.broadcast %72 : i32 to vector<1x1xi32>
    %c0_21 = arith.constant 0 : index
    %c0_22 = arith.constant 0 : index
    %c0_23 = arith.constant 0 : index
    %74 = vector.load %arg4[%c0_21, %c0_22, %c0_23] : memref<1x1x1xf32, #tpu.memory_space<vmem>>, vector<1x1x1xf32>
    %75 = vector.shape_cast %63 : vector<1x1xf32> to vector<1x1x1xf32>
    %76 = arith.addf %74, %75 : vector<1x1x1xf32>
    %c0_24 = arith.constant 0 : index
    %c0_25 = arith.constant 0 : index
    %c0_26 = arith.constant 0 : index
    %77 = vector.load %arg4[%c0_24, %c0_25, %c0_26] : memref<1x1x1xf32, #tpu.memory_space<vmem>>, vector<1x1x1xf32>
    tpu.vector_store %arg4[%c0_24, %c0_25, %c0_26], %76 {strides = array<i32>} : memref<1x1x1xf32, #tpu.memory_space<vmem>>, vector<1x1x1xf32>,
    %c0_27 = arith.constant 0 : index
    %c0_28 = arith.constant 0 : index
    %c0_29 = arith.constant 0 : index
    %78 = vector.load %arg5[%c0_27, %c0_28, %c0_29] : memref<1x1x1xi32, #tpu.memory_space<vmem>>, vector<1x1x1xi32>
    %79 = vector.shape_cast %73 : vector<1x1xi32> to vector<1x1x1xi32>
    %80 = arith.addi %78, %79 : vector<1x1x1xi32>
    %c0_30 = arith.constant 0 : index
    %c0_31 = arith.constant 0 : index
    %c0_32 = arith.constant 0 : index
    %81 = vector.load %arg5[%c0_30, %c0_31, %c0_32] : memref<1x1x1xi32, #tpu.memory_space<vmem>>, vector<1x1x1xi32>
    tpu.vector_store %arg5[%c0_30, %c0_31, %c0_32], %80 {strides = array<i32>} : memref<1x1x1xi32, #tpu.memory_space<vmem>>, vector<1x1x1xi32>,
    %c1_i32_33 = arith.constant 1 : i32
    return
  }
  func.func @transform_0(%arg0: i32, %arg1: i32) -> (i32, i32) {
    %c1_i32 = arith.constant 1 : i32
    %0 = arith.muli %arg0, %c1_i32 : i32
    %1 = arith.addi %0, %arg1 : i32
    %c0_i32 = arith.constant 0 : i32
    %2 = arith.minsi %1, %c0_i32 : i32
    %c0_i32_0 = arith.constant 0 : i32
    %c0_i32_1 = arith.constant 0 : i32
    return %2, %c0_i32_0 : i32, i32
  }
  func.func @transform_1(%arg0: i32, %arg1: i32) -> (i32, i32) {
    %c1_i32 = arith.constant 1 : i32
    %0 = arith.muli %arg0, %c1_i32 : i32
    %1 = arith.addi %0, %arg1 : i32
    %c0_i32 = arith.constant 0 : i32
    %2 = arith.minsi %1, %c0_i32 : i32
    %c0_i32_0 = arith.constant 0 : i32
    %c0_i32_1 = arith.constant 0 : i32
    return %2, %c0_i32_0 : i32, i32
  }
  func.func @transform_2(%arg0: i32, %arg1: i32) -> (i32, i32, i32) {
    %c0_i32 = arith.constant 0 : i32
    %c0_i32_0 = arith.constant 0 : i32
    %c0_i32_1 = arith.constant 0 : i32
    return %arg0, %c0_i32, %c0_i32_0 : i32, i32, i32
  }
  func.func @transform_3(%arg0: i32, %arg1: i32) -> (i32, i32, i32) {
    %c0_i32 = arith.constant 0 : i32
    %c0_i32_0 = arith.constant 0 : i32
    %c0_i32_1 = arith.constant 0 : i32
    return %arg0, %c0_i32, %c0_i32_0 : i32, i32, i32
  }
}

</mosaic_0001>

<llo_original>
// kernel: tpu_custom_call.1
$region0: #{tpu_custom_call.1}
  #allocation0 [shape = 'u32[]', space=smem, size = 0x4, offset = 0x4, fixed_abs, tag = 'smem constant byte address 0x4 - core index']
  #allocation1 [shape = 'u32[144,128]{1,0:T(1,128)}', space=vmem, size = 0x12000, scoped, tag = 'internal scratch']
  %s0 = inlined_call_operand.vmem [shape: f32[16,128], index: 0, kind: input, shape index: {}]
  %s1 = inlined_call_operand.vmem [shape: s32[16,1], index: 1, kind: input, shape index: {}]
  %s2 = inlined_call_operand.vmem [shape: f32[2,1,1], index: 2, kind: output, shape index: {0}]
  %s3 = inlined_call_operand.vmem [shape: s32[2,1,1], index: 3, kind: output, shape index: {1}]
  %4 = xla_tuple %s2, %s3
  %s5 = sld [smem:[#allocation0]]
  $region53: #{tpu_custom_call.1} parent=0
    _
  %s7 = ssub.s32 1, %s5
  %s8 = scalar_select 0, %s7, %s5
  loop: start=0, step=1, limit=4
  $region2: #{tpu_custom_call.1} parent=0 // loop_pre_header
    _
  $region3: #{tpu_custom_call.1} parent=0 // loop_header
    %s10 = sphi 0, %s14
    %p11 = scmp.ge.s32.totalorder %s10, 4
    %s17 = sphi 0, %s29
    %s18 = sphi 0, %s25
    %s19 = sphi 0, %s17
    %s20 = sphi 0, %s18
    %s21 = sphi 0, %s19
    %s22 = sphi 0, %s20
    %s38 = sphi 0, %s40
    %s41 = sphi 0, %s38
    %s42 = sphi 0, %s41
    %s58 = sphi 0, %s42
    %s70 = sphi 0, %s72
    %s73 = sphi 0, %s70
    %s74 = sphi 0, %s73
    %s90 = sphi 0, %s74
    %s96 = sphi 0, %s98
    %s99 = sphi 0, %s96
    %s100 = sphi 0, %s99
    %s116 = sphi 0, %s100
    %s122 = sphi 0, %s124
    %s125 = sphi 0, %s122
    %s126 = sphi 0, %s125
    %s142 = sphi 0, %s126
  $region4: #{tpu_custom_call.1} parent=0 // loop_header_branch
    %13 = sbr.rel (%p11) target = $region8
  $region5: #{tpu_custom_call.1} parent=0 // loop_body
    %s15 = ssub.s32 %s10, 1
    %s16 = ssub.s32 %s10, 2
    %s23 = sadd.s32 1, %s18
    %p24 = scmp.ge.s32.totalorder %s23, 1
    %s25 = scalar_select %p24, 0, %s23
    %s26 = sadd.s32 1, %s17
    %s27 = scalar_select %p24, %s26, %s17
    %p28 = scmp.ge.s32.totalorder %s27, 2
    %s29 = scalar_select %p28, 0, %s27
    %s30 = sadd.s32 %s17, %s18
    %p31 = scmp.lt.s32.totalorder %s30, 0
    %s32 = scalar_select %p31, %s30, 0
    %s33 = sadd.s32 %s29, %s25
    %p34 = scmp.lt.s32.totalorder %s33, 0
    %s35 = scalar_select %p34, %s33, 0
    %s36 = ssub.s32 %s32, %s35
    %p37 = scmp.eq.s32.totalorder %s36, 0
    %s39 = sadd.s32 %s38, 1
    %s40 = scalar_select %p37, %s38, %s39
    %p43 = pneg %p37
    %p44 = scmp.eq.s32.totalorder %s10, 1
    %p45 = por %p43, %p44
    %p46 = scmp.ne.s32.totalorder %s38, %s41
    %p47 = scmp.eq.s32.totalorder %s10, 0
    %p48 = por %p46, %p47
    %p49 = scmp.ne.s32.totalorder %s38, %s41
    %p50 = scmp.eq.s32.totalorder %s15, 1
    %p51 = por %p49, %p50
    %p52 = scmp.ne.s32.totalorder %s41, %s42
    %p53 = scmp.eq.s32.totalorder %s15, 0
    %p54 = por %p52, %p53
    %p55 = scmp.ne.s32.totalorder %s41, %s42
    %p56 = scmp.eq.s32.totalorder %s16, 1
    %p57 = por %p55, %p56
    %p59 = scmp.ne.s32.totalorder %s42, %s58
    %p60 = scmp.eq.s32.totalorder %s16, 0
    %p61 = por %p59, %p60
    %s62 = sadd.s32 %s17, %s18
    %p63 = scmp.lt.s32.totalorder %s62, 0
    %s64 = scalar_select %p63, %s62, 0
    %s65 = sadd.s32 %s29, %s25
    %p66 = scmp.lt.s32.totalorder %s65, 0
    %s67 = scalar_select %p66, %s65, 0
    %s68 = ssub.s32 %s64, %s67
    %p69 = scmp.eq.s32.totalorder %s68, 0
    %s71 = sadd.s32 %s70, 1
    %s72 = scalar_select %p69, %s70, %s71
    %p75 = pneg %p69
    %p76 = scmp.eq.s32.totalorder %s10, 1
    %p77 = por %p75, %p76
    %p78 = scmp.ne.s32.totalorder %s70, %s73
    %p79 = scmp.eq.s32.totalorder %s10, 0
    %p80 = por %p78, %p79
    %p81 = scmp.ne.s32.totalorder %s70, %s73
    %p82 = scmp.eq.s32.totalorder %s15, 1
    %p83 = por %p81, %p82
    %p84 = scmp.ne.s32.totalorder %s73, %s74
    %p85 = scmp.eq.s32.totalorder %s15, 0
    %p86 = por %p84, %p85
    %p87 = scmp.ne.s32.totalorder %s73, %s74
    %p88 = scmp.eq.s32.totalorder %s16, 1
    %p89 = por %p87, %p88
    %p91 = scmp.ne.s32.totalorder %s74, %s90
    %p92 = scmp.eq.s32.totalorder %s16, 0
    %p93 = por %p91, %p92
    %s94 = ssub.s32 %s17, %s29
    %p95 = scmp.eq.s32.totalorder %s94, 0
    %s97 = sadd.s32 %s96, 1
    %s98 = scalar_select %p95, %s96, %s97
    %p101 = pneg %p95
    %p102 = scmp.eq.s32.totalorder %s10, 1
    %p103 = por %p101, %p102
    %p104 = scmp.ne.s32.totalorder %s96, %s99
    %p105 = scmp.eq.s32.totalorder %s10, 0
    %p106 = por %p104, %p105
    %p107 = scmp.ne.s32.totalorder %s96, %s99
    %p108 = scmp.eq.s32.totalorder %s15, 1
    %p109 = por %p107, %p108
    %p110 = scmp.ne.s32.totalorder %s99, %s100
    %p111 = scmp.eq.s32.totalorder %s15, 0
    %p112 = por %p110, %p111
    %p113 = scmp.ne.s32.totalorder %s99, %s100
    %p114 = scmp.eq.s32.totalorder %s16, 1
    %p115 = por %p113, %p114
    %p117 = scmp.ne.s32.totalorder %s100, %s116
    %p118 = scmp.eq.s32.totalorder %s16, 0
    %p119 = por %p117, %p118
    %s120 = ssub.s32 %s17, %s29
    %p121 = scmp.eq.s32.totalorder %s120, 0
    %s123 = sadd.s32 %s122, 1
    %s124 = scalar_select %p121, %s122, %s123
    %p127 = pneg %p121
    %p128 = scmp.eq.s32.totalorder %s10, 1
    %p129 = por %p127, %p128
    %p130 = scmp.ne.s32.totalorder %s122, %s125
    %p131 = scmp.eq.s32.totalorder %s10, 0
    %p132 = por %p130, %p131
    %p133 = scmp.ne.s32.totalorder %s122, %s125
    %p134 = scmp.eq.s32.totalorder %s15, 1
    %p135 = por %p133, %p134
    %p136 = scmp.ne.s32.totalorder %s125, %s126
    %p137 = scmp.eq.s32.totalorder %s15, 0
    %p138 = por %p136, %p137
    %p139 = scmp.ne.s32.totalorder %s125, %s126
    %p140 = scmp.eq.s32.totalorder %s16, 1
    %p141 = por %p139, %p140
    %p143 = scmp.ne.s32.totalorder %s126, %s142
    %p144 = scmp.eq.s32.totalorder %s16, 0
    %p145 = por %p143, %p144
    %p146 = scmp.le.s32.totalorder 1, %s10
    %p147 = scmp.lt.s32.totalorder %s10, 3
    %p148 = pnand %p146, %p147
    %p149 = pneg %p148
    // Predicated region
    $region9: #{tpu_custom_call.1} parent=5 // pred_check
      _
    $region10: #{tpu_custom_call.1} parent=5 // pred_check_branch
      %151 = sbr.rel (%p148) target = $region12
    $region11: #{tpu_custom_call.1} parent=5 // pred_region
      %s152 = ssub.s32 %s10, 1
    $region12: #{tpu_custom_call.1} parent=5 // pred_fallthru
      _
    %p153 = scmp.lt.s32.totalorder %s10, 2
    // Predicated region
    $region13: #{tpu_custom_call.1} parent=5 // pred_check
      %p154 = pneg %p153
    $region14: #{tpu_custom_call.1} parent=5 // pred_check_branch
      %156 = sbr.rel (%p154) target = $region16
    $region15: #{tpu_custom_call.1} parent=5 // pred_region
      // Predicated region
      $region17: #{tpu_custom_call.1} parent=15 // pred_check
        %p157 = pneg %p48
      $region18: #{tpu_custom_call.1} parent=15 // pred_check_branch
        %159 = sbr.rel (%p157) target = $region20
      $region19: #{tpu_custom_call.1} parent=15 // pred_region
        %s160 = sadd.s32 %s17, %s18
        %p161 = scmp.lt.s32.totalorder %s160, 0
        %s162 = scalar_select %p161, %s160, 0
        %s163 = smul.u32 2, %s162
        %p164 = scmp.lt.s32.totalorder %s163, 1
        %s165 = scalar_select %p164, %s163, 1
        %s166 = smul.addr %s165, 8
        %s167 = scalar_lea.vmem %s0, %s166
        %s168 = sadd.s32 %s17, %s18
        %p169 = scmp.lt.s32.totalorder %s168, 0
        %s170 = scalar_select %p169, %s168, 0
        %s171 = smul.u32 2, %s170
      $region20: #{tpu_custom_call.1} parent=15 // pred_fallthru
        _
      // Predicated region
      $region21: #{tpu_custom_call.1} parent=15 // pred_check
        %p172 = pneg %p80
      $region22: #{tpu_custom_call.1} parent=15 // pred_check_branch
        %174 = sbr.rel (%p172) target = $region24
      $region23: #{tpu_custom_call.1} parent=15 // pred_region
        %s175 = sadd.s32 %s17, %s18
        %p176 = scmp.lt.s32.totalorder %s175, 0
        %s177 = scalar_select %p176, %s175, 0
        %s178 = smul.u32 2, %s177
        %p179 = scmp.lt.s32.totalorder %s178, 1
        %s180 = scalar_select %p179, %s178, 1
        %s181 = smul.addr %s180, 8
        %s182 = scalar_lea.vmem %s1, %s181
        %s183 = sadd.s32 %s17, %s18
        %p184 = scmp.lt.s32.totalorder %s183, 0
        %s185 = scalar_select %p184, %s183, 0
        %s186 = smul.u32 2, %s185
      $region24: #{tpu_custom_call.1} parent=15 // pred_fallthru
        _
    $region16: #{tpu_custom_call.1} parent=5 // pred_fallthru
      _
    %p187 = scmp.le.s32.totalorder 1, %s10
    %p188 = scmp.lt.s32.totalorder %s10, 3
    %p189 = pnand %p187, %p188
    %p190 = pneg %p189
    // Predicated region
    $region25: #{tpu_custom_call.1} parent=5 // pred_check
      _
    $region26: #{tpu_custom_call.1} parent=5 // pred_check_branch
      %192 = sbr.rel (%p189) target = $region28
    $region27: #{tpu_custom_call.1} parent=5 // pred_region
      %s193 = ssub.s32 %s10, 1
      %s194 = sadd.s32 %s19, %s20
      %p195 = scmp.lt.s32.totalorder %s194, 0
      %s196 = scalar_select %p195, %s194, 0
      %s197 = smul.u32 2, %s196
      %p198 = scmp.lt.s32.totalorder %s197, 1
      %s199 = scalar_select %p198, %s197, 1
      %s200 = smul.addr %s199, 8
      %s201 = scalar_lea.vmem %s0, %s200
      %p202 = pneg %p54
      %p203 = pneg %p51
      %s204 = sadd.s32 %s19, %s20
      %p205 = scmp.lt.s32.totalorder %s204, 0
      %s206 = scalar_select %p205, %s204, 0
      %s207 = smul.u32 2, %s206
      %p208 = scmp.lt.s32.totalorder %s207, 1
      %s209 = scalar_select %p208, %s207, 1
      %s210 = smul.addr %s209, 8
      %s211 = scalar_lea.vmem %s1, %s210
      %p212 = pneg %p86
      %p213 = pneg %p83
      %p214 = pneg %p112
      %p215 = pneg %p109
      %p216 = scmp.lt.s32.totalorder %s19, 1
      %s217 = scalar_select %p216, %s19, 1
      %s218 = scalar_lea.vmem %s2, %s217
      %p219 = pneg %p138
      %p220 = pneg %p135
      %p221 = scmp.lt.s32.totalorder %s19, 1
      %s222 = scalar_select %p221, %s19, 1
      %s223 = scalar_lea.vmem %s3, %s222
      %s224 = sadd.s32 %s19, %s20
      %p225 = scmp.lt.s32.totalorder %s224, 0
      %s226 = scalar_select %p225, %s224, 0
      %s227 = smul.u32 2, %s226
      %p228 = scmp.lt.s32.totalorder %s227, 1
      %s229 = scalar_select %p228, %s227, 1
      %s230 = smul.addr %s229, 8
      %s231 = scalar_lea.vmem %s0, %s230
      %s232 = sadd.s32 %s19, %s20
      %p233 = scmp.lt.s32.totalorder %s232, 0
      %s234 = scalar_select %p233, %s232, 0
      %s235 = smul.u32 2, %s234
      %s236 = sadd.s32 %s19, %s20
      %p237 = scmp.lt.s32.totalorder %s236, 0
      %s238 = scalar_select %p237, %s236, 0
      %s239 = smul.u32 2, %s238
      %p240 = scmp.lt.s32.totalorder %s239, 1
      %s241 = scalar_select %p240, %s239, 1
      %s242 = smul.addr %s241, 8
      %s243 = scalar_lea.vmem %s1, %s242
      %s244 = sadd.s32 %s19, %s20
      %p245 = scmp.lt.s32.totalorder %s244, 0
      %s246 = scalar_select %p245, %s244, 0
      %s247 = smul.u32 2, %s246
      %p248 = scmp.lt.s32.totalorder %s19, 1
      %s249 = scalar_select %p248, %s19, 1
      %s250 = scalar_lea.vmem %s2, %s249
      %p251 = scmp.lt.s32.totalorder %s19, 1
      %s252 = scalar_select %p251, %s19, 1
      %s253 = scalar_lea.vmem %s3, %s252
      %p254 = scmp.eq.s32.totalorder %s20, 0
      // Predicated region
      $region29: #{tpu_custom_call.1} parent=27 // pred_check
        %p255 = pneg %p254
      $region30: #{tpu_custom_call.1} parent=27 // pred_check_branch
        %257 = sbr.rel (%p255) target = $region32
      $region31: #{tpu_custom_call.1} parent=27 // pred_region
        %vm258 = vcmask 0
        %259 = vst.msk [vmem:[%s250] sm:$0x1] %vm258, 0.0
        %260 = vst.msk [vmem:[%s253] sm:$0x1] %vm258, 0
      $region32: #{tpu_custom_call.1} parent=27 // pred_fallthru
        _
      %s261 = sadd.s32 %s19, %s20
      %s262 = smul.u32 %s261, 16
      %v263 = vld [vmem:[%s231] sm:$0xff]
      %v264 = vld [vmem:[%s231 + $0x8] sm:$0xff]
      %v265 = vld [vmem:[%s243] sm:$0xff]
      %v266 = vld [vmem:[%s243 + $0x8] sm:$0xff]
      %267 = vmax.xlane.f32.xlu0 %v263
      %v268 = vpop.xlane.xlu0 %267
      %269 = vmax.xlane.f32.xlu0 %v264
      %v270 = vpop.xlane.xlu0 %269
      %v271 = vsub.f32 %v263, %v268
      %v272 = vsub.f32 %v264, %v270
      %v273 = vmul.f32 %v271, 1.442695
      %v274 = vpow.pop %v273
      %v275 = vmul.f32 %v272, 1.442695
      %v276 = vpow.pop %v275
      %277 = vadd.xlane.f32.xlu0 %v274
      %v278 = vpop.xlane.xlu0 %277
      %279 = vadd.xlane.f32.xlu0 %v276
      %v280 = vpop.xlane.xlu0 %279
      %v281 = vlog2.pop %v278
      %v282 = vmul.f32 %v281, 0.6931472
      %v283 = vlog2.pop %v280
      %v284 = vmul.f32 %v283, 0.6931472
      %v285 = vlaneseq
      %v286 = vand.u32 %v285, 127
      %287 = vset.pattern.permute.xlu0 0
      %288 = vperm.xlu0 %287, %v265
      %v289 = vpop.permute.xlu0 %288
      %290 = vset.pattern.permute.xlu0 0
      %291 = vperm.xlu0 %290, %v266
      %v292 = vpop.permute.xlu0 %291
      %vm293 = vcmp.eq.s32.totalorder %v286, %v289
      %vm294 = vcmp.eq.s32.totalorder %v286, %v292
      %v295 = vsel %vm293, %v263, 0.0
      %v296 = vsel %vm294, %v264, 0.0
      %297 = vadd.xlane.f32.xlu0 %v295
      %v298 = vpop.xlane.xlu0 %297
      %299 = vadd.xlane.f32.xlu0 %v296
      %v300 = vpop.xlane.xlu0 %299
      %301 = vadd.xlane.f32.xlu0 %v263
      %v302 = vpop.xlane.xlu0 %301
      %303 = vadd.xlane.f32.xlu0 %v264
      %v304 = vpop.xlane.xlu0 %303
      %v305 = vsub.f32 %v298, %v268
      %v306 = vsub.f32 %v300, %v270
      %v307 = vmul.f32 %v268, 128.0
      %v308 = vmul.f32 %v270, 128.0
      %v309 = vsub.f32 %v302, %v307
      %v310 = vsub.f32 %v304, %v308
      %v311 = vmul.f32 %v305, 0.9
      %v312 = vmul.f32 %v306, 0.9
      %v313 = vsub.f32 %v309, %v305
      %v314 = vsub.f32 %v310, %v306
      %v315 = vmul.f32 %v313, 0.0007874016
      %v316 = vmul.f32 %v314, 0.0007874016
      %v317 = vadd.f32 %v311, %v315
      %v318 = vadd.f32 %v312, %v316
      %v319 = vsub.f32 %v282, %v317
      %v320 = vsub.f32 %v284, %v318
      %vm321 = vcmp.eq.f32.partialorder %v263, %v268
      %vm322 = vcmp.eq.f32.partialorder %v264, %v270
      %v323 = vsel %vm321, %v286, 128
      %v324 = vsel %vm322, %v286, 128
      %v325 = vand.u32 %v323, 65535
      %v326 = vshra.s32 %v323, 16
      %v327 = vcvt.s32.f32 %v325
      %v328 = vcvt.s32.f32 %v326
      %329 = vmin.xlane.f32.xlu0 %v328
      %v330 = vpop.xlane.xlu0 %329
      %vm331 = vcmp.eq.f32.partialorder %v328, %v330
      %v332 = vsel %vm331, %v327, inf
      %333 = vmin.xlane.f32.xlu0 %v332
      %v334 = vpop.xlane.xlu0 %333
      %v335 = vcvt.f32.s32 %v334
      %v336 = vcvt.f32.s32 %v330
      %v337 = vshll.u32 %v336, 16
      %v338 = vadd.s32 %v337, %v335
      %v339 = vand.u32 %v324, 65535
      %v340 = vshra.s32 %v324, 16
      %v341 = vcvt.s32.f32 %v339
      %v342 = vcvt.s32.f32 %v340
      %343 = vmin.xlane.f32.xlu0 %v342
      %v344 = vpop.xlane.xlu0 %343
      %vm345 = vcmp.eq.f32.partialorder %v342, %v344
      %v346 = vsel %vm345, %v341, inf
      %347 = vmin.xlane.f32.xlu0 %v346
      %v348 = vpop.xlane.xlu0 %347
      %v349 = vcvt.f32.s32 %v348
      %v350 = vcvt.f32.s32 %v344
      %v351 = vshll.u32 %v350, 16
      %v352 = vadd.s32 %v351, %v349
      %v353 = vlaneseq
      %v354 = vshrl.u32 %v353, 7
      %v355 = vadd.s32 %v354, 8
      %v356 = vstv %s262
      %v357 = vadd.s32 %v356, %v354
      %v358 = vadd.s32 %v356, %v355
      %vm359 = vcmp.lt.s32.totalorder %v357, 16
      %vm360 = vcmp.lt.s32.totalorder %v358, 16
      %vm361 = vcmp.ne.s32.totalorder %v265, 0
      %vm362 = vcmp.ne.s32.totalorder %v266, 0
      %vm363 = vmand %vm359, %vm361
      %vm364 = vmand %vm360, %vm362
      %v365 = vsel %vm363, %v319, 0.0
      %v366 = vsel %vm364, %v320, 0.0
      %vm367 = vcmask 7168
      %v368 = vsel %vm367, %v365, 0.0
      %v369 = vsel %vm367, %v366, 0.0
      %v370 = vadd.f32 %v368, %v369
      %371 = vadd.xlane.f32.xlu0 %v370
      %v372 = vpop.xlane.xlu0 %371
      %v373 = vrot.slane %v372, 4
      %v374 = vadd.f32 %v372, %v373
      %v375 = vrot.slane %v374, 2
      %v376 = vadd.f32 %v374, %v375
      %v377 = vrot.slane %v376, 1
      %v378 = vadd.f32 %v376, %v377
      %s379 = vtos %v378
      %vm380 = vcmp.eq.s32.totalorder %v338, %v265
      %vm381 = vcmp.eq.s32.totalorder %v352, %v266
      %vm382 = vmand %vm363, %vm380
      %vm383 = vmand %vm364, %vm381
      %v384 = vsel %vm382, 1, 0
      %v385 = vsel %vm383, 1, 0
      %v386 = vsel %vm367, %v384, 0
      %v387 = vsel %vm367, %v385, 0
      %v388 = vadd.s32 %v386, %v387
      %v389 = vand.u32 %v388, 65535
      %v390 = vshrl.u32 %v388, 16
      %v391 = vcvt.s32.f32 %v389
      %v392 = vcvt.s32.f32 %v390
      %393 = vadd.xlane.f32.xlu0 %v391
      %v394 = vpop.xlane.xlu0 %393
      %395 = vadd.xlane.f32.xlu0 %v392
      %v396 = vpop.xlane.xlu0 %395
      %v397 = vcvt.f32.s32 %v394
      %v398 = vcvt.f32.s32 %v396
      %v399 = vshll.u32 %v398, 16
      %v400 = vadd.s32 %v399, %v397
      %v401 = vrot.slane %v400, 4
      %v402 = vadd.s32 %v400, %v401
      %v403 = vrot.slane %v402, 2
      %v404 = vadd.s32 %v402, %v403
      %v405 = vrot.slane %v404, 1
      %v406 = vadd.s32 %v404, %v405
      %s407 = vtos %v406
      %v408 = vld [vmem:[%s250] sm:$0x1]
      %v409 = vstv %s379
      %v410 = vadd.f32 %v408, %v409
      %vm411 = vcmask 0
      %412 = vst.msk [vmem:[%s250] sm:$0x1] %vm411, %v410
      %v413 = vld [vmem:[%s253] sm:$0x1]
      %v414 = vstv %s407
      %v415 = vadd.s32 %v413, %v414
      %416 = vst.msk [vmem:[%s253] sm:$0x1] %vm411, %v415
      %p417 = scmp.lt.s32.totalorder %s19, 1
      %s418 = scalar_select %p417, %s19, 1
      %s419 = scalar_lea.vmem %s2, %s418
      %p420 = scmp.lt.s32.totalorder %s19, 1
      %s421 = scalar_select %p420, %s19, 1
      %s422 = scalar_lea.vmem %s3, %s421
      // Predicated region
      $region33: #{tpu_custom_call.1} parent=27 // pred_check
        %p423 = pneg %p109
      $region34: #{tpu_custom_call.1} parent=27 // pred_check_branch
        %425 = sbr.rel (%p423) target = $region36
      $region35: #{tpu_custom_call.1} parent=27 // pred_region
        _
      $region36: #{tpu_custom_call.1} parent=27 // pred_fallthru
        _
      // Predicated region
      $region37: #{tpu_custom_call.1} parent=27 // pred_check
        %p426 = pneg %p135
      $region38: #{tpu_custom_call.1} parent=27 // pred_check_branch
        %428 = sbr.rel (%p426) target = $region40
      $region39: #{tpu_custom_call.1} parent=27 // pred_region
        _
      $region40: #{tpu_custom_call.1} parent=27 // pred_fallthru
        _
    $region28: #{tpu_custom_call.1} parent=5 // pred_fallthru
      _
    %p429 = scmp.le.s32.totalorder 2, %s10
    // Predicated region
    $region41: #{tpu_custom_call.1} parent=5 // pred_check
      %p430 = pneg %p429
    $region42: #{tpu_custom_call.1} parent=5 // pred_check_branch
      %432 = sbr.rel (%p430) target = $region44
    $region43: #{tpu_custom_call.1} parent=5 // pred_region
      %s433 = ssub.s32 %s10, 2
      // Predicated region
      $region45: #{tpu_custom_call.1} parent=43 // pred_check
        %p434 = pneg %p115
      $region46: #{tpu_custom_call.1} parent=43 // pred_check_branch
        %436 = sbr.rel (%p434) target = $region48
      $region47: #{tpu_custom_call.1} parent=43 // pred_region
        %p437 = scmp.lt.s32.totalorder %s21, 1
        %s438 = scalar_select %p437, %s21, 1
        %s439 = scalar_lea.vmem %s2, %s438
      $region48: #{tpu_custom_call.1} parent=43 // pred_fallthru
        _
      // Predicated region
      $region49: #{tpu_custom_call.1} parent=43 // pred_check
        %p440 = pneg %p141
      $region50: #{tpu_custom_call.1} parent=43 // pred_check_branch
        %442 = sbr.rel (%p440) target = $region52
      $region51: #{tpu_custom_call.1} parent=43 // pred_region
        %p443 = scmp.lt.s32.totalorder %s21, 1
        %s444 = scalar_select %p443, %s21, 1
        %s445 = scalar_lea.vmem %s3, %s444
      $region52: #{tpu_custom_call.1} parent=43 // pred_fallthru
        _
    $region44: #{tpu_custom_call.1} parent=5 // pred_fallthru
      _
  $region6: #{tpu_custom_call.1} parent=0 // loop_footer
    %s14 = sadd.s32 1, %s10
  $region7: #{tpu_custom_call.1} parent=0 // loop_footer_branch
    %9 = sbr.rel target = $region3
  $region8: #{tpu_custom_call.1} parent=0 // loop_exit
    _

</llo_original>
